<compile_context>
chip_gen: v5e
topology: v5e:2x2
jax: 0.10.0
libtpu: 0.0.40
codegen_flags: <defaults>
</compile_context>

<pallas_src>
import functools
import math

import jax
import jax.numpy as jnp
from jax.experimental import pallas as pl
from jax.experimental.pallas import tpu as pltpu


def _round_up(x, m):
    return ((x + m - 1) // m) * m


# -----------------------------------------------------------------------------
# Pallas kernel: out = W @ cols + bias
#   W:    (C_out, CK)  resident across the whole grid (bf16)
#   cols: (CK, P)      tiled along the pixel/lane axis (bf16)
#   bias: (C_out, 1)   f32
#   out:  (C_out, P)   f32
# -----------------------------------------------------------------------------
def _gemm_bias_kernel(w_ref, cols_ref, bias_ref, out_ref):
    acc = jnp.dot(w_ref[...], cols_ref[...], preferred_element_type=jnp.float32)
    out_ref[...] = (acc + bias_ref[...]).astype(out_ref.dtype)


def conv_gemm(w, cols, bias, *, tp_max=1024, compute_dtype=jnp.bfloat16):
    """Pallas-backed  W @ cols + bias  with lane-dense pixel-axis tiling."""
    c_out, ck = w.shape
    ck2, p = cols.shape
    assert ck == ck2

    # Adaptive pixel tile: multiple of 128, at most tp_max, no padding when the
    # pixel count is already a multiple of 128 and <= tp_max.
    tp = min(tp_max, _round_up(p, 128))
    p_pad = _round_up(p, tp)
    if p_pad != p:
        cols = jnp.pad(cols, ((0, 0), (0, p_pad - p)))

    w_c = w.astype(compute_dtype)
    cols_c = cols.astype(compute_dtype)   # fused into the cols producer by XLA
    bias2d = bias.reshape(c_out, 1).astype(jnp.float32)

    grid = (p_pad // tp,)
    out = pl.pallas_call(
        _gemm_bias_kernel,
        out_shape=jax.ShapeDtypeStruct((c_out, p_pad), jnp.float32),
        grid_spec=pltpu.PrefetchScalarGridSpec(
            num_scalar_prefetch=0,
            grid=grid,
            in_specs=[
                pl.BlockSpec((c_out, ck), lambda i: (0, 0)),
                pl.BlockSpec((ck, tp), lambda i: (0, i)),
                pl.BlockSpec((c_out, 1), lambda i: (0, 0)),
            ],
            out_specs=pl.BlockSpec((c_out, tp), lambda i: (0, i)),
        ),
        compiler_params=pltpu.CompilerParams(
            # "parallel" lets the pixel grid shard across v7x's 2 TensorCores;
            # neutral on v5e/v6e.  32 MiB is within scoped VMEM on every
            # generation (v7x physical VMEM is only 64 MiB) and far above the
            # double-buffered tile footprint at tp<=1024.
            dimension_semantics=("parallel",),
            vmem_limit_bytes=32 * 1024 * 1024,
        ),
    )(w_c, cols_c, bias2d)
    return out[:, :p] if p_pad != p else out


# -----------------------------------------------------------------------------
# Glue: static im2col (standard conv) and deformable bilinear im2col.
# -----------------------------------------------------------------------------
def im2col(x, kh, kw, stride, pad, dilation):
    # TODO(synk): implicit-GEMM fusion (overlapping-window BlockSpec) would
    # avoid materializing the Kx read-amplified cols in HBM; kept explicit.
    n, c, h, w = x.shape
    ho = (h + 2 * pad - (dilation * (kh - 1) + 1)) // stride + 1
    wo = (w + 2 * pad - (dilation * (kw - 1) + 1)) // stride + 1
    xp = jnp.pad(x, ((0, 0), (0, 0), (pad, pad), (pad, pad)))
    pats = []
    for i in range(kh):
        for j in range(kw):
            hs, ws = i * dilation, j * dilation
            pats.append(xp[:, :, hs:hs + (ho - 1) * stride + 1:stride,
                           ws:ws + (wo - 1) * stride + 1:stride])
    patches = jnp.stack(pats, axis=2)                       # (N, C, K, Ho, Wo)
    cols = patches.transpose(1, 2, 0, 3, 4).reshape(c * kh * kw, n * ho * wo)
    return cols, ho, wo


def deform_im2col(x, offset, mask, kh, kw, stride, pad, dilation):
    """Bilinear-sampled, mask-modulated im2col columns of DCNv2 (dg == 1).

    Returns cols of shape (C*K, N*Ho*Wo) with the modulation mask already
    folded in (so the GEMM only streams a single operand).
    """
    # TODO(synk): the data-dependent bilinear gather has no clean Pallas
    # equivalent (irregular per-pixel indices); it stays in plain JAX.
    n, c, h, w = x.shape
    k = kh * kw
    ho, wo = mask.shape[2], mask.shape[3]

    off_y = offset[:, 0::2]                                 # (N, K, Ho, Wo)
    off_x = offset[:, 1::2]                                 # (N, K, Ho, Wo)

    hs = (jnp.arange(ho) * stride - pad).astype(jnp.float32)
    ws = (jnp.arange(wo) * stride - pad).astype(jnp.float32)
    ki = (jnp.repeat(jnp.arange(kh), kw) * dilation).astype(jnp.float32)
    kj = (jnp.tile(jnp.arange(kw), kh) * dilation).astype(jnp.float32)

    y = off_y + hs[None, None, :, None] + ki[None, :, None, None]
    xx = off_x + ws[None, None, None, :] + kj[None, :, None, None]

    valid = (y > -1) & (xx > -1) & (y < h) & (xx < w)
    y0 = jnp.floor(y)
    x0 = jnp.floor(xx)
    ly, lx = y - y0, xx - x0
    hy, hx = 1.0 - ly, 1.0 - lx
    y0i = y0.astype(jnp.int32)
    x0i = x0.astype(jnp.int32)
    y1i = y0i + 1
    x1i = x0i + 1

    flat = x.reshape(n, c, h * w)

    def corner(yi, xi, wgt):
        inb = (yi >= 0) & (yi <= h - 1) & (xi >= 0) & (xi <= w - 1)
        yc = jnp.clip(yi, 0, h - 1)
        xc = jnp.clip(xi, 0, w - 1)
        idx = (yc * w + xc).reshape(n, 1, k * ho * wo)
        idx = jnp.broadcast_to(idx, (n, c, k * ho * wo))
        v = jnp.take_along_axis(flat, idx, axis=2).reshape(n, c, k, ho, wo)
        return v * (wgt * inb.astype(x.dtype))[:, None]

    val = (corner(y0i, x0i, hy * hx) + corner(y0i, x1i, hy * lx) +
           corner(y1i, x0i, ly * hx) + corner(y1i, x1i, ly * lx))
    val = val * valid[:, None].astype(x.dtype)              # (N, C, K, Ho, Wo)
    # Fold the modulation mask in here (fused by XLA into the gather epilogue)
    # instead of streaming a second full (CK, P) operand through the GEMM.
    val = val * mask[:, None]                               # (N, C, K, Ho, Wo)

    cols = val.transpose(1, 2, 0, 3, 4).reshape(c * k, n * ho * wo)
    return cols


def plain_conv2d(x, w, b, stride, padding, dilation=1):
    """Standard conv via im2col + Pallas GEMM (used for conv_offset_mask)."""
    c_out, _, kh, kw = w.shape
    n = x.shape[0]
    cols, ho, wo = im2col(x, kh, kw, stride, padding, dilation)
    out = conv_gemm(w.reshape(c_out, -1), cols, b)
    return out.reshape(c_out, n, ho, wo).transpose(1, 0, 2, 3)


# -----------------------------------------------------------------------------
# Functional forward (jitted once per module instance)
# -----------------------------------------------------------------------------
def _forward_impl(x, feat_off, weight, bias, com_weight, com_bias,
                  kernel_size, stride, padding, dilation):
    kh, kw = kernel_size
    c_out = weight.shape[0]
    n = x.shape[0]

    # 1) conv_offset_mask (Pallas GEMM; nn.Conv2d has dilation=1)
    out_om = plain_conv2d(feat_off, com_weight, com_bias, stride, padding, 1)

    # 2) split into o1 / o2 / mask, build offset, sigmoid the mask
    o1, o2, mask = jnp.split(out_om, 3, axis=1)
    offset = jnp.concatenate((o1, o2), axis=1)              # (N, 2K, Ho, Wo)
    mask = jax.nn.sigmoid(mask)                             # (N,  K, Ho, Wo)

    # jit-friendly replacement for the host-syncing float(mean(|offset|)):
    offset_mean = jnp.mean(jnp.abs(offset))
    jax.lax.cond(
        offset_mean > 100.0,
        lambda m: jax.debug.print(
            "WARNING: Offset mean is {m}, larger than 100.", m=m),
        lambda m: None,
        offset_mean)

    # 3) deformable bilinear im2col (JAX gather glue; mask folded in)
    cols = deform_im2col(x, offset, mask, kh, kw, stride, padding, dilation)

    # 4) main GEMM + bias (Pallas kernel on the MXU)
    ho, wo = mask.shape[2], mask.shape[3]
    out = conv_gemm(weight.reshape(c_out, -1), cols, bias)
    return out.reshape(c_out, n, ho, wo).transpose(1, 0, 2, 3)


# -----------------------------------------------------------------------------
# ModulatedDeformConvPack2 (forward only)
# -----------------------------------------------------------------------------
class ModulatedDeformConvPack2:

    def __init__(self, in_channels, out_channels, kernel_size, stride=1,
                 padding=0, dilation=1, groups=1, deformable_groups=1,
                 bias=True, extra_offset_mask=False, offset_in_channel=32,
                 key=None):
        assert groups == 1 and deformable_groups == 1, \
            "only groups == deformable_groups == 1 supported here"
        self.in_channels = in_channels
        self.out_channels = out_channels
        self.kernel_size = (kernel_size, kernel_size) if isinstance(
            kernel_size, int) else tuple(kernel_size)
        self.stride = stride
        self.padding = padding
        self.dilation = dilation
        self.deformable_groups = deformable_groups
        self.extra_offset_mask = extra_offset_mask
        kh, kw = self.kernel_size

        k_w, k_cw, k_cb = jax.random.split(key, 3)

        # main deform-conv weight: uniform(-stdv, stdv), bias zero
        # (matches ModulatedDeformConv.reset_parameters).
        stdv = 1.0 / math.sqrt(in_channels * kh * kw)
        self.weight = jax.random.uniform(
            k_w, (out_channels, in_channels, kh, kw), jnp.float32,
            minval=-stdv, maxval=stdv)
        self.bias = jnp.zeros((out_channels,), jnp.float32)

        # conv_offset_mask: the PyTorch module zero-inits it (init_offset); we
        # use small deterministic random values so the deformable sampling
        # path is actually exercised.  Shapes match nn.Conv2d in __init__.
        n_om = deformable_groups * 3 * kh * kw
        self.com_weight = 0.05 * jax.random.normal(
            k_cw, (n_om, offset_in_channel, kh, kw), jnp.float32)
        self.com_bias = 0.05 * jax.random.normal(k_cb, (n_om,), jnp.float32)

        self._forward = jax.jit(functools.partial(
            _forward_impl,
            kernel_size=self.kernel_size,
            stride=self.stride,
            padding=self.padding,
            dilation=self.dilation))

    def __call__(self, x):
        if self.extra_offset_mask:
            feat_off = x[1]
            x = x[0]
        else:
            feat_off = x
        return self._forward(x, feat_off, self.weight, self.bias,
                             self.com_weight, self.com_bias)


# -----------------------------------------------------------------------------
if __name__ == "__main__":
    key = jax.random.PRNGKey(0)
    k_mod, k_x = jax.random.split(key)

    N, C_in, H, W = 2, 8, 16, 16
    C_out, K = 8, 3

    module = ModulatedDeformConvPack2(
        C_in, C_out, K, stride=1, padding=1, dilation=1,
        groups=1, deformable_groups=1, bias=True,
        extra_offset_mask=False, offset_in_channel=C_in, key=k_mod)

    x = jax.random.normal(k_x, (N, C_in, H, W), jnp.float32)

    y = module(x)
    y = jax.block_until_ready(y)
    assert y.shape == (N, C_out, H, W), y.shape

    # Sanity check 1: Pallas GEMM of conv_offset_mask vs lax.conv reference
    # (bf16-streamed GEMM -> loose tolerances).
    ref_om = jax.lax.conv_general_dilated(
        x, module.com_weight, (1, 1), [(1, 1), (1, 1)],
        rhs_dilation=(1, 1),
        dimension_numbers=("NCHW", "OIHW", "NCHW")) \
        + module.com_bias[None, :, None, None]
    got_om = plain_conv2d(x, module.com_weight, module.com_bias, 1, 1, 1)
    assert jnp.allclose(ref_om, got_om, atol=3e-2, rtol=3e-2)

    # Sanity check 2: main Pallas GEMM vs dense jnp reference on the same
    # (mask-modulated) columns.
    o1, o2, m = jnp.split(got_om, 3, axis=1)
    offset = jnp.concatenate((o1, o2), axis=1)
    m = jax.nn.sigmoid(m)
    cols = deform_im2col(x, offset, m, K, K, 1, 1, 1)
    ref = module.weight.reshape(C_out, -1) @ cols + module.bias[:, None]
    ref = ref.reshape(C_out, N, H, W).transpose(1, 0, 2, 3)
    assert jnp.allclose(ref, y, atol=5e-2, rtol=5e-2)

    print("KERNEL_OK")
</pallas_src>

<mosaic_0001>
module attributes {stable_mosaic.version = 11 : i64} {
  func.func @_gemm_bias_kernel(%arg0: i32, %arg1: memref<27x72xbf16, #tpu.memory_space<vmem>>, %arg2: memref<72x512xbf16, #tpu.memory_space<vmem>>, %arg3: memref<27x1xf32, #tpu.memory_space<vmem>>, %arg4: memref<27x512xf32, #tpu.memory_space<vmem>>) attributes {dimension_semantics = [#tpu.dimension_semantics<parallel>], iteration_bounds = array<i64: 1>, scalar_prefetch = 0 : i64, scratch_operands = 0 : i64, tpu.core_type = #tpu.core_type<tc>, window_params = [{pipeline_mode = #tpu.pipeline_mode<synchronous>, transform_indices = @transform_0, window_bounds = array<i64: 27, 72>}, {transform_indices = @transform_1, window_bounds = array<i64: 72, 512>}, {pipeline_mode = #tpu.pipeline_mode<synchronous>, transform_indices = @transform_2, window_bounds = array<i64: 27, 1>}, {transform_indices = @transform_3, window_bounds = array<i64: 27, 512>}]} {
    %c0 = arith.constant 0 : index
    %c0_0 = arith.constant 0 : index
    %0 = vector.load %arg1[%c0, %c0_0] : memref<27x72xbf16, #tpu.memory_space<vmem>>, vector<27x72xbf16>
    %c0_1 = arith.constant 0 : index
    %c0_2 = arith.constant 0 : index
    %1 = vector.load %arg2[%c0_1, %c0_2] : memref<72x512xbf16, #tpu.memory_space<vmem>>, vector<72x512xbf16>
    %cst = arith.constant dense<0.000000e+00> : vector<27x512xf32>
    %2 = tpu.matmul %0, %1, %cst {dimension_numbers = #tpu.dot_dimension_numbers<[1], [0], [0], [1], [0, 0, 1, 1], [], []>} : vector<27x72xbf16>, vector<72x512xbf16>, vector<27x512xf32> -> vector<27x512xf32>
    %c0_3 = arith.constant 0 : index
    %c0_4 = arith.constant 0 : index
    %3 = vector.load %arg3[%c0_3, %c0_4] : memref<27x1xf32, #tpu.memory_space<vmem>>, vector<27x1xf32>
    %4 = vector.broadcast %3 : vector<27x1xf32> to vector<27x512xf32>
    %5 = arith.addf %2, %4 : vector<27x512xf32>
    %c0_5 = arith.constant 0 : index
    %c0_6 = arith.constant 0 : index
    %6 = vector.load %arg4[%c0_5, %c0_6] : memref<27x512xf32, #tpu.memory_space<vmem>>, vector<27x512xf32>
    tpu.vector_store %arg4[%c0_5, %c0_6], %5 {strides = array<i32>} : memref<27x512xf32, #tpu.memory_space<vmem>>, vector<27x512xf32>,
    return
  }
  func.func @transform_0(%arg0: i32) -> (i32, i32) {
    %c0_i32 = arith.constant 0 : i32
    %c0_i32_0 = arith.constant 0 : i32
    %c0_i32_1 = arith.constant 0 : i32
    return %c0_i32, %c0_i32_0 : i32, i32
  }
  func.func @transform_1(%arg0: i32) -> (i32, i32) {
    %c0_i32 = arith.constant 0 : i32
    %c0_i32_0 = arith.constant 0 : i32
    return %c0_i32, %arg0 : i32, i32
  }
  func.func @transform_2(%arg0: i32) -> (i32, i32) {
    %c0_i32 = arith.constant 0 : i32
    %c0_i32_0 = arith.constant 0 : i32
    %c0_i32_1 = arith.constant 0 : i32
    return %c0_i32, %c0_i32_0 : i32, i32
  }
  func.func @transform_3(%arg0: i32) -> (i32, i32) {
    %c0_i32 = arith.constant 0 : i32
    %c0_i32_0 = arith.constant 0 : i32
    return %c0_i32, %arg0 : i32, i32
  }
}

module attributes {stable_mosaic.version = 11 : i64} {
  func.func @_gemm_bias_kernel(%arg0: i32, %arg1: memref<8x72xbf16, #tpu.memory_space<vmem>>, %arg2: memref<72x512xbf16, #tpu.memory_space<vmem>>, %arg3: memref<8x1xf32, #tpu.memory_space<vmem>>, %arg4: memref<8x512xf32, #tpu.memory_space<vmem>>) attributes {dimension_semantics = [#tpu.dimension_semantics<parallel>], iteration_bounds = array<i64: 1>, scalar_prefetch = 0 : i64, scratch_operands = 0 : i64, tpu.core_type = #tpu.core_type<tc>, window_params = [{pipeline_mode = #tpu.pipeline_mode<synchronous>, transform_indices = @transform_0, window_bounds = array<i64: 8, 72>}, {transform_indices = @transform_1, window_bounds = array<i64: 72, 512>}, {pipeline_mode = #tpu.pipeline_mode<synchronous>, transform_indices = @transform_2, window_bounds = array<i64: 8, 1>}, {transform_indices = @transform_3, window_bounds = array<i64: 8, 512>}]} {
    %c0 = arith.constant 0 : index
    %c0_0 = arith.constant 0 : index
    %0 = vector.load %arg1[%c0, %c0_0] : memref<8x72xbf16, #tpu.memory_space<vmem>>, vector<8x72xbf16>
    %c0_1 = arith.constant 0 : index
    %c0_2 = arith.constant 0 : index
    %1 = vector.load %arg2[%c0_1, %c0_2] : memref<72x512xbf16, #tpu.memory_space<vmem>>, vector<72x512xbf16>
    %cst = arith.constant dense<0.000000e+00> : vector<8x512xf32>
    %2 = tpu.matmul %0, %1, %cst {dimension_numbers = #tpu.dot_dimension_numbers<[1], [0], [0], [1], [0, 0, 1, 1], [], []>} : vector<8x72xbf16>, vector<72x512xbf16>, vector<8x512xf32> -> vector<8x512xf32>
    %c0_3 = arith.constant 0 : index
    %c0_4 = arith.constant 0 : index
    %3 = vector.load %arg3[%c0_3, %c0_4] : memref<8x1xf32, #tpu.memory_space<vmem>>, vector<8x1xf32>
    %4 = vector.broadcast %3 : vector<8x1xf32> to vector<8x512xf32>
    %5 = arith.addf %2, %4 : vector<8x512xf32>
    %c0_5 = arith.constant 0 : index
    %c0_6 = arith.constant 0 : index
    %6 = vector.load %arg4[%c0_5, %c0_6] : memref<8x512xf32, #tpu.memory_space<vmem>>, vector<8x512xf32>
    tpu.vector_store %arg4[%c0_5, %c0_6], %5 {strides = array<i32>} : memref<8x512xf32, #tpu.memory_space<vmem>>, vector<8x512xf32>,
    return
  }
  func.func @transform_0(%arg0: i32) -> (i32, i32) {
    %c0_i32 = arith.constant 0 : i32
    %c0_i32_0 = arith.constant 0 : i32
    %c0_i32_1 = arith.constant 0 : i32
    return %c0_i32, %c0_i32_0 : i32, i32
  }
  func.func @transform_1(%arg0: i32) -> (i32, i32) {
    %c0_i32 = arith.constant 0 : i32
    %c0_i32_0 = arith.constant 0 : i32
    return %c0_i32, %arg0 : i32, i32
  }
  func.func @transform_2(%arg0: i32) -> (i32, i32) {
    %c0_i32 = arith.constant 0 : i32
    %c0_i32_0 = arith.constant 0 : i32
    %c0_i32_1 = arith.constant 0 : i32
    return %c0_i32, %c0_i32_0 : i32, i32
  }
  func.func @transform_3(%arg0: i32) -> (i32, i32) {
    %c0_i32 = arith.constant 0 : i32
    %c0_i32_0 = arith.constant 0 : i32
    return %c0_i32, %arg0 : i32, i32
  }
}

</mosaic_0001>

<llo_original>
// kernel: _forward_impl.2
$region0: #{_forward_impl.2}
  #allocation0 [shape = 'u32[]', space=smem, size = 0x4, offset = 0x4, fixed_abs, tag = 'smem constant byte address 0x4 - core index']
  #allocation1 [shape = 'u32[72,128]{1,0:T(1,128)}', space=vmem, size = 0x9000, scoped, tag = 'internal scratch']
  %s0 = inlined_call_operand.vmem [shape: bf16[27,72], index: 0, kind: input, shape index: {}]
  %s1 = inlined_call_operand.vmem [shape: bf16[72,512], index: 1, kind: input, shape index: {}]
  %s2 = inlined_call_operand.vmem [shape: f32[27,1], index: 2, kind: input, shape index: {}]
  %s3 = inlined_call_operand.vmem [shape: f32[27,512], index: 3, kind: output, shape index: {}]
  %s4 = sld [smem:[#allocation0]]
  $region22: #{_forward_impl.2} parent=0
    _
  %s6 = ssub.s32 1, %s4
  %s7 = scalar_select 0, %s6, %s4
  // Predicated region
  $region2: #{_forward_impl.2} parent=0 // pred_check
    _
  $region3: #{_forward_impl.2} parent=0 // pred_check_branch
    %9 = sbr.rel (0) target = $region5
  $region4: #{_forward_impl.2} parent=0 // pred_region
    _
  $region5: #{_forward_impl.2} parent=0 // pred_fallthru
    _
  // Predicated region
  $region6: #{_forward_impl.2} parent=0 // pred_check
    _
  $region7: #{_forward_impl.2} parent=0 // pred_check_branch
    %11 = sbr.rel (0) target = $region9
  $region8: #{_forward_impl.2} parent=0 // pred_region
    _
  $region9: #{_forward_impl.2} parent=0 // pred_fallthru
    _
  // Predicated region
  $region10: #{_forward_impl.2} parent=0 // pred_check
    _
  $region11: #{_forward_impl.2} parent=0 // pred_check_branch
    %13 = sbr.rel (0) target = $region13
  $region12: #{_forward_impl.2} parent=0 // pred_region
    _
  $region13: #{_forward_impl.2} parent=0 // pred_fallthru
    _
  %v15 = vld [vmem:[%s0] sm:$0xf]
  %v16 = vld [vmem:[%s0 + $0x4] sm:$0xf]
  %v17 = vld [vmem:[%s0 + $0x8] sm:$0xf]
  %v18 = vld [vmem:[%s0 + $0xc] sm:$0x3]
  %v19 = vld [vmem:[%s1] sm:$0xff]
  %v20 = vld [vmem:[%s1 + $0x8] sm:$0xff]
  %v21 = vld [vmem:[%s1 + $0x10] sm:$0xff]
  %v22 = vld [vmem:[%s1 + $0x18] sm:$0xff]
  %v23 = vld [vmem:[%s1 + $0x20] sm:$0xff]
  %v24 = vld [vmem:[%s1 + $0x28] sm:$0xff]
  %v25 = vld [vmem:[%s1 + $0x30] sm:$0xff]
  %v26 = vld [vmem:[%s1 + $0x38] sm:$0xff]
  %v27 = vld [vmem:[%s1 + $0x40] sm:$0xff]
  %v28 = vld [vmem:[%s1 + $0x48] sm:$0xff]
  %v29 = vld [vmem:[%s1 + $0x50] sm:$0xff]
  %v30 = vld [vmem:[%s1 + $0x58] sm:$0xff]
  %v31 = vld [vmem:[%s1 + $0x60] sm:$0xff]
  %v32 = vld [vmem:[%s1 + $0x68] sm:$0xff]
  %v33 = vld [vmem:[%s1 + $0x70] sm:$0xff]
  %v34 = vld [vmem:[%s1 + $0x78] sm:$0xff]
  %v35 = vld [vmem:[%s1 + $0x80] sm:$0xff]
  %v36 = vld [vmem:[%s1 + $0x88] sm:$0xff]
  %v37 = vld [vmem:[%s2] sm:$0xff]
  %v38 = vld [vmem:[%s2 + $0x8] sm:$0xff]
  %v39 = vld [vmem:[%s2 + $0x10] sm:$0xff]
  %v40 = vld [vmem:[%s2 + $0x18] sm:$0x7]
  %42 = vset.pattern.permute.xlu0 0
  %43 = vperm.xlu0 %42, %v37
  %v44 = vpop.permute.xlu0 %43
  %47 = vset.pattern.permute.xlu0 0
  %48 = vperm.xlu0 %47, %v38
  %v49 = vpop.permute.xlu0 %48
  %52 = vset.pattern.permute.xlu0 0
  %53 = vperm.xlu0 %52, %v39
  %v54 = vpop.permute.xlu0 %53
  %57 = vset.pattern.permute.xlu0 0
  %58 = vperm.xlu0 %57, %v40
  %v59 = vpop.permute.xlu0 %58
  %v65 = vunpack.c.l.b16 %v15
  %v66 = vunpack.c.l.b16 %v16
  %v67 = vunpack.c.l.b16 %v17
  %v68 = vunpack.c.l.b16 %v18
  %v69 = vpack.c.b16 %v66, %v65
  %v70 = vpack.c.b16 %v68, %v67
  %v89 = vunpack.c.l.b16 %v19
  %v90 = vunpack.c.h.b16 %v19
  %v91 = vunpack.c.l.b16 %v20
  %v92 = vunpack.c.h.b16 %v20
  %v93 = vunpack.c.l.b16 %v21
  %v94 = vunpack.c.h.b16 %v21
  %v95 = vunpack.c.l.b16 %v22
  %v96 = vunpack.c.h.b16 %v22
  %v97 = vunpack.c.l.b16 %v23
  %v98 = vunpack.c.h.b16 %v23
  %v99 = vunpack.c.l.b16 %v24
  %v100 = vunpack.c.h.b16 %v24
  %v101 = vunpack.c.l.b16 %v25
  %v102 = vunpack.c.h.b16 %v25
  %v103 = vunpack.c.l.b16 %v26
  %v104 = vunpack.c.h.b16 %v26
  %v105 = vunpack.c.l.b16 %v27
  %v106 = vunpack.c.h.b16 %v27
  %v107 = vunpack.c.l.b16 %v28
  %v108 = vunpack.c.h.b16 %v28
  %v109 = vunpack.c.l.b16 %v29
  %v110 = vunpack.c.h.b16 %v29
  %v111 = vunpack.c.l.b16 %v30
  %v112 = vunpack.c.h.b16 %v30
  %v113 = vunpack.c.l.b16 %v31
  %v114 = vunpack.c.h.b16 %v31
  %v115 = vunpack.c.l.b16 %v32
  %v116 = vunpack.c.h.b16 %v32
  %v117 = vunpack.c.l.b16 %v33
  %v118 = vunpack.c.h.b16 %v33
  %v119 = vunpack.c.l.b16 %v34
  %v120 = vunpack.c.h.b16 %v34
  %v121 = vunpack.c.l.b16 %v35
  %v122 = vunpack.c.h.b16 %v35
  %v123 = vunpack.c.l.b16 %v36
  %v124 = vunpack.c.h.b16 %v36
  %v125 = vpack.c.b16 %v93, %v89
  %v126 = vpack.c.b16 %v94, %v90
  %v127 = vpack.c.b16 %v95, %v91
  %v128 = vpack.c.b16 %v96, %v92
  %v129 = vpack.c.b16 %v101, %v97
  %v130 = vpack.c.b16 %v102, %v98
  %v131 = vpack.c.b16 %v103, %v99
  %v132 = vpack.c.b16 %v104, %v100
  %v133 = vpack.c.b16 %v109, %v105
  %v134 = vpack.c.b16 %v110, %v106
  %v135 = vpack.c.b16 %v111, %v107
  %v136 = vpack.c.b16 %v112, %v108
  %v137 = vpack.c.b16 %v117, %v113
  %v138 = vpack.c.b16 %v118, %v114
  %v139 = vpack.c.b16 %v119, %v115
  %v140 = vpack.c.b16 %v120, %v116
  %v141 = vpack.c.b16 %v121, %v121
  %v142 = vpack.c.b16 %v122, %v122
  %v143 = vpack.c.b16 %v123, %v123
  %v144 = vpack.c.b16 %v124, %v124
  %vm161 = vcmask 588800
  %v163 = vsel %vm161, %v69, 0
  %v166 = vsel %vm161, %v70, 0
  %vm168 = vcmask 1043456
  %v170 = vsel %vm168, %v141, 0
  %v173 = vsel %vm168, %v142, 0
  %v176 = vsel %vm168, %v143, 0
  %v179 = vsel %vm168, %v144, 0
  %181 = vmatpush.bf16.msra.mxu0 0
  %182 = vmatpush.bf16.msra.mxu0 0
  %183 = vmatpush.bf16.msra.mxu0 0
  %184 = vmatpush.bf16.msra.mxu0 %v170
  %185 = vmatpush.bf16.msra.mxu0 %v137
  %186 = vmatpush.bf16.msra.mxu0 %v133
  %187 = vmatpush.bf16.msra.mxu0 %v129
  %188 = vmatpush.bf16.msra.mxu0 %v125
  %189 = vmatmul.bf16.gmra.mxu0 %v163
  %v190 = vpop.f32.mrf.mxu0
  %v191 = vadd.f32 %v44, %v190
  %v192 = vpop.f32.mrf.mxu0
  %v193 = vadd.f32 %v49, %v192
  %194 = vmatmul.bf16.gmra.mxu0 %v166
  %v195 = vpop.f32.mrf.mxu0
  %v196 = vadd.f32 %v54, %v195
  %v197 = vpop.f32.mrf.mxu0
  %v198 = vadd.f32 %v59, %v197
  %199 = vdwg.mxu0
  %200 = vmatpush.bf16.msra.mxu0 0
  %201 = vmatpush.bf16.msra.mxu0 0
  %202 = vmatpush.bf16.msra.mxu0 0
  %203 = vmatpush.bf16.msra.mxu0 %v173
  %204 = vmatpush.bf16.msra.mxu0 %v138
  %205 = vmatpush.bf16.msra.mxu0 %v134
  %206 = vmatpush.bf16.msra.mxu0 %v130
  %207 = vmatpush.bf16.msra.mxu0 %v126
  %208 = vmatmul.bf16.gmra.mxu0 %v163
  %v209 = vpop.f32.mrf.mxu0
  %v210 = vadd.f32 %v44, %v209
  %v211 = vpop.f32.mrf.mxu0
  %v212 = vadd.f32 %v49, %v211
  %213 = vmatmul.bf16.gmra.mxu0 %v166
  %v214 = vpop.f32.mrf.mxu0
  %v215 = vadd.f32 %v54, %v214
  %v216 = vpop.f32.mrf.mxu0
  %v217 = vadd.f32 %v59, %v216
  %218 = vdwg.mxu0
  %219 = vmatpush.bf16.msra.mxu0 0
  %220 = vmatpush.bf16.msra.mxu0 0
  %221 = vmatpush.bf16.msra.mxu0 0
  %222 = vmatpush.bf16.msra.mxu0 %v176
  %223 = vmatpush.bf16.msra.mxu0 %v139
  %224 = vmatpush.bf16.msra.mxu0 %v135
  %225 = vmatpush.bf16.msra.mxu0 %v131
  %226 = vmatpush.bf16.msra.mxu0 %v127
  %227 = vmatmul.bf16.gmra.mxu0 %v163
  %v228 = vpop.f32.mrf.mxu0
  %v229 = vadd.f32 %v44, %v228
  %v230 = vpop.f32.mrf.mxu0
  %v231 = vadd.f32 %v49, %v230
  %232 = vmatmul.bf16.gmra.mxu0 %v166
  %v233 = vpop.f32.mrf.mxu0
  %v234 = vadd.f32 %v54, %v233
  %v235 = vpop.f32.mrf.mxu0
  %v236 = vadd.f32 %v59, %v235
  %237 = vdwg.mxu0
  %238 = vmatpush.bf16.msra.mxu0 0
  %239 = vmatpush.bf16.msra.mxu0 0
  %240 = vmatpush.bf16.msra.mxu0 0
  %241 = vmatpush.bf16.msra.mxu0 %v179
  %242 = vmatpush.bf16.msra.mxu0 %v140
  %243 = vmatpush.bf16.msra.mxu0 %v136
  %244 = vmatpush.bf16.msra.mxu0 %v132
  %245 = vmatpush.bf16.msra.mxu0 %v128
  %246 = vmatmul.bf16.gmra.mxu0 %v163
  %v247 = vpop.f32.mrf.mxu0
  %v248 = vadd.f32 %v44, %v247
  %v249 = vpop.f32.mrf.mxu0
  %v250 = vadd.f32 %v49, %v249
  %251 = vmatmul.bf16.gmra.mxu0 %v166
  %v252 = vpop.f32.mrf.mxu0
  %v253 = vadd.f32 %v54, %v252
  %v254 = vpop.f32.mrf.mxu0
  %v255 = vadd.f32 %v59, %v254
  %256 = vdwg.mxu0
  %257 = vst [vmem:[%s3] sm:$0xff] %v191
  %258 = vst [vmem:[%s3 + $0x8] sm:$0xff] %v210
  %259 = vst [vmem:[%s3 + $0x10] sm:$0xff] %v229
  %260 = vst [vmem:[%s3 + $0x18] sm:$0xff] %v248
  %261 = vst [vmem:[%s3 + $0x20] sm:$0xff] %v193
  %262 = vst [vmem:[%s3 + $0x28] sm:$0xff] %v212
  %263 = vst [vmem:[%s3 + $0x30] sm:$0xff] %v231
  %264 = vst [vmem:[%s3 + $0x38] sm:$0xff] %v250
  %265 = vst [vmem:[%s3 + $0x40] sm:$0xff] %v196
  %266 = vst [vmem:[%s3 + $0x48] sm:$0xff] %v215
  %267 = vst [vmem:[%s3 + $0x50] sm:$0xff] %v234
  %268 = vst [vmem:[%s3 + $0x58] sm:$0xff] %v253
  %269 = vst [vmem:[%s3 + $0x60] sm:$0x7] %v198
  %270 = vst [vmem:[%s3 + $0x68] sm:$0x7] %v217
  %271 = vst [vmem:[%s3 + $0x70] sm:$0x7] %v236
  %272 = vst [vmem:[%s3 + $0x78] sm:$0x7] %v255
  // Predicated region
  $region14: #{_forward_impl.2} parent=0 // pred_check
    _
  $region15: #{_forward_impl.2} parent=0 // pred_check_branch
    %274 = sbr.rel (0) target = $region17
  $region16: #{_forward_impl.2} parent=0 // pred_region
    _
  $region17: #{_forward_impl.2} parent=0 // pred_fallthru
    _
  // Predicated region
  $region18: #{_forward_impl.2} parent=0 // pred_check
    _
  $region19: #{_forward_impl.2} parent=0 // pred_check_branch
    %276 = sbr.rel (0) target = $region21
  $region20: #{_forward_impl.2} parent=0 // pred_region
    _
  $region21: #{_forward_impl.2} parent=0 // pred_fallthru
    _

// kernel: _forward_impl.3
$region0: #{_forward_impl.3}
  #allocation0 [shape = 'u32[]', space=smem, size = 0x4, offset = 0x4, fixed_abs, tag = 'smem constant byte address 0x4 - core index']
  #allocation1 [shape = 'u32[72,128]{1,0:T(1,128)}', space=vmem, size = 0x9000, scoped, tag = 'internal scratch']
  %s0 = inlined_call_operand.vmem [shape: bf16[8,72], index: 0, kind: input, shape index: {}]
  %s1 = inlined_call_operand.vmem [shape: bf16[72,512], index: 1, kind: input, shape index: {}]
  %s2 = inlined_call_operand.vmem [shape: f32[8,1], index: 2, kind: input, shape index: {}]
  %s3 = inlined_call_operand.vmem [shape: f32[8,512], index: 3, kind: output, shape index: {}]
  %s4 = sld [smem:[#allocation0]]
  $region22: #{_forward_impl.3} parent=0
    _
  %s6 = ssub.s32 1, %s4
  %s7 = scalar_select 0, %s6, %s4
  // Predicated region
  $region2: #{_forward_impl.3} parent=0 // pred_check
    _
  $region3: #{_forward_impl.3} parent=0 // pred_check_branch
    %9 = sbr.rel (0) target = $region5
  $region4: #{_forward_impl.3} parent=0 // pred_region
    _
  $region5: #{_forward_impl.3} parent=0 // pred_fallthru
    _
  // Predicated region
  $region6: #{_forward_impl.3} parent=0 // pred_check
    _
  $region7: #{_forward_impl.3} parent=0 // pred_check_branch
    %11 = sbr.rel (0) target = $region9
  $region8: #{_forward_impl.3} parent=0 // pred_region
    _
  $region9: #{_forward_impl.3} parent=0 // pred_fallthru
    _
  // Predicated region
  $region10: #{_forward_impl.3} parent=0 // pred_check
    _
  $region11: #{_forward_impl.3} parent=0 // pred_check_branch
    %13 = sbr.rel (0) target = $region13
  $region12: #{_forward_impl.3} parent=0 // pred_region
    _
  $region13: #{_forward_impl.3} parent=0 // pred_fallthru
    _
  %v15 = vld [vmem:[%s0] sm:$0xf]
  %v16 = vld [vmem:[%s1] sm:$0xff]
  %v17 = vld [vmem:[%s1 + $0x8] sm:$0xff]
  %v18 = vld [vmem:[%s1 + $0x10] sm:$0xff]
  %v19 = vld [vmem:[%s1 + $0x18] sm:$0xff]
  %v20 = vld [vmem:[%s1 + $0x20] sm:$0xff]
  %v21 = vld [vmem:[%s1 + $0x28] sm:$0xff]
  %v22 = vld [vmem:[%s1 + $0x30] sm:$0xff]
  %v23 = vld [vmem:[%s1 + $0x38] sm:$0xff]
  %v24 = vld [vmem:[%s1 + $0x40] sm:$0xff]
  %v25 = vld [vmem:[%s1 + $0x48] sm:$0xff]
  %v26 = vld [vmem:[%s1 + $0x50] sm:$0xff]
  %v27 = vld [vmem:[%s1 + $0x58] sm:$0xff]
  %v28 = vld [vmem:[%s1 + $0x60] sm:$0xff]
  %v29 = vld [vmem:[%s1 + $0x68] sm:$0xff]
  %v30 = vld [vmem:[%s1 + $0x70] sm:$0xff]
  %v31 = vld [vmem:[%s1 + $0x78] sm:$0xff]
  %v32 = vld [vmem:[%s1 + $0x80] sm:$0xff]
  %v33 = vld [vmem:[%s1 + $0x88] sm:$0xff]
  %v34 = vld [vmem:[%s2] sm:$0xff]
  %36 = vset.pattern.permute.xlu0 0
  %37 = vperm.xlu0 %36, %v34
  %v38 = vpop.permute.xlu0 %37
  %v58 = vunpack.c.l.b16 %v16
  %v59 = vunpack.c.h.b16 %v16
  %v60 = vunpack.c.l.b16 %v17
  %v61 = vunpack.c.h.b16 %v17
  %v62 = vunpack.c.l.b16 %v18
  %v63 = vunpack.c.h.b16 %v18
  %v64 = vunpack.c.l.b16 %v19
  %v65 = vunpack.c.h.b16 %v19
  %v66 = vunpack.c.l.b16 %v20
  %v67 = vunpack.c.h.b16 %v20
  %v68 = vunpack.c.l.b16 %v21
  %v69 = vunpack.c.h.b16 %v21
  %v70 = vunpack.c.l.b16 %v22
  %v71 = vunpack.c.h.b16 %v22
  %v72 = vunpack.c.l.b16 %v23
  %v73 = vunpack.c.h.b16 %v23
  %v74 = vunpack.c.l.b16 %v24
  %v75 = vunpack.c.h.b16 %v24
  %v76 = vunpack.c.l.b16 %v25
  %v77 = vunpack.c.h.b16 %v25
  %v78 = vunpack.c.l.b16 %v26
  %v79 = vunpack.c.h.b16 %v26
  %v80 = vunpack.c.l.b16 %v27
  %v81 = vunpack.c.h.b16 %v27
  %v82 = vunpack.c.l.b16 %v28
  %v83 = vunpack.c.h.b16 %v28
  %v84 = vunpack.c.l.b16 %v29
  %v85 = vunpack.c.h.b16 %v29
  %v86 = vunpack.c.l.b16 %v30
  %v87 = vunpack.c.h.b16 %v30
  %v88 = vunpack.c.l.b16 %v31
  %v89 = vunpack.c.h.b16 %v31
  %v90 = vunpack.c.l.b16 %v32
  %v91 = vunpack.c.h.b16 %v32
  %v92 = vunpack.c.l.b16 %v33
  %v93 = vunpack.c.h.b16 %v33
  %v94 = vpack.c.b16 %v62, %v58
  %v95 = vpack.c.b16 %v63, %v59
  %v96 = vpack.c.b16 %v64, %v60
  %v97 = vpack.c.b16 %v65, %v61
  %v98 = vpack.c.b16 %v70, %v66
  %v99 = vpack.c.b16 %v71, %v67
  %v100 = vpack.c.b16 %v72, %v68
  %v101 = vpack.c.b16 %v73, %v69
  %v102 = vpack.c.b16 %v78, %v74
  %v103 = vpack.c.b16 %v79, %v75
  %v104 = vpack.c.b16 %v80, %v76
  %v105 = vpack.c.b16 %v81, %v77
  %v106 = vpack.c.b16 %v86, %v82
  %v107 = vpack.c.b16 %v87, %v83
  %v108 = vpack.c.b16 %v88, %v84
  %v109 = vpack.c.b16 %v89, %v85
  %v110 = vpack.c.b16 %v90, %v90
  %v111 = vpack.c.b16 %v91, %v91
  %v112 = vpack.c.b16 %v92, %v92
  %v113 = vpack.c.b16 %v93, %v93
  %vm130 = vcmask 588800
  %v132 = vsel %vm130, %v15, 0
  %vm134 = vcmask 1043456
  %v136 = vsel %vm134, %v110, 0
  %v139 = vsel %vm134, %v111, 0
  %v142 = vsel %vm134, %v112, 0
  %v145 = vsel %vm134, %v113, 0
  %147 = vmatpush.bf16.msra.mxu0 0
  %148 = vmatpush.bf16.msra.mxu0 0
  %149 = vmatpush.bf16.msra.mxu0 0
  %150 = vmatpush.bf16.msra.mxu0 %v136
  %151 = vmatpush.bf16.msra.mxu0 %v106
  %152 = vmatpush.bf16.msra.mxu0 %v102
  %153 = vmatpush.bf16.msra.mxu0 %v98
  %154 = vmatpush.bf16.msra.mxu0 %v94
  %155 = vmatmul.bf16.gmra.mxu0 %v132
  %v156 = vpop.f32.mrf.mxu0
  %v157 = vadd.f32 %v38, %v156
  %v158 = vpop.f32.mrf.mxu0
  %159 = vdwg.mxu0
  %160 = vmatpush.bf16.msra.mxu0 0
  %161 = vmatpush.bf16.msra.mxu0 0
  %162 = vmatpush.bf16.msra.mxu0 0
  %163 = vmatpush.bf16.msra.mxu0 %v139
  %164 = vmatpush.bf16.msra.mxu0 %v107
  %165 = vmatpush.bf16.msra.mxu0 %v103
  %166 = vmatpush.bf16.msra.mxu0 %v99
  %167 = vmatpush.bf16.msra.mxu0 %v95
  %168 = vmatmul.bf16.gmra.mxu0 %v132
  %v169 = vpop.f32.mrf.mxu0
  %v170 = vadd.f32 %v38, %v169
  %v171 = vpop.f32.mrf.mxu0
  %172 = vdwg.mxu0
  %173 = vmatpush.bf16.msra.mxu0 0
  %174 = vmatpush.bf16.msra.mxu0 0
  %175 = vmatpush.bf16.msra.mxu0 0
  %176 = vmatpush.bf16.msra.mxu0 %v142
  %177 = vmatpush.bf16.msra.mxu0 %v108
  %178 = vmatpush.bf16.msra.mxu0 %v104
  %179 = vmatpush.bf16.msra.mxu0 %v100
  %180 = vmatpush.bf16.msra.mxu0 %v96
  %181 = vmatmul.bf16.gmra.mxu0 %v132
  %v182 = vpop.f32.mrf.mxu0
  %v183 = vadd.f32 %v38, %v182
  %v184 = vpop.f32.mrf.mxu0
  %185 = vdwg.mxu0
  %186 = vmatpush.bf16.msra.mxu0 0
  %187 = vmatpush.bf16.msra.mxu0 0
  %188 = vmatpush.bf16.msra.mxu0 0
  %189 = vmatpush.bf16.msra.mxu0 %v145
  %190 = vmatpush.bf16.msra.mxu0 %v109
  %191 = vmatpush.bf16.msra.mxu0 %v105
  %192 = vmatpush.bf16.msra.mxu0 %v101
  %193 = vmatpush.bf16.msra.mxu0 %v97
  %194 = vmatmul.bf16.gmra.mxu0 %v132
  %v195 = vpop.f32.mrf.mxu0
  %v196 = vadd.f32 %v38, %v195
  %v197 = vpop.f32.mrf.mxu0
  %198 = vdwg.mxu0
  %199 = vst [vmem:[%s3] sm:$0xff] %v157
  %200 = vst [vmem:[%s3 + $0x8] sm:$0xff] %v170
  %201 = vst [vmem:[%s3 + $0x10] sm:$0xff] %v183
  %202 = vst [vmem:[%s3 + $0x18] sm:$0xff] %v196
  // Predicated region
  $region14: #{_forward_impl.3} parent=0 // pred_check
    _
  $region15: #{_forward_impl.3} parent=0 // pred_check_branch
    %204 = sbr.rel (0) target = $region17
  $region16: #{_forward_impl.3} parent=0 // pred_region
    _
  $region17: #{_forward_impl.3} parent=0 // pred_fallthru
    _
  // Predicated region
  $region18: #{_forward_impl.3} parent=0 // pred_check
    _
  $region19: #{_forward_impl.3} parent=0 // pred_check_branch
    %206 = sbr.rel (0) target = $region21
  $region20: #{_forward_impl.3} parent=0 // pred_region
    _
  $region21: #{_forward_impl.3} parent=0 // pred_fallthru
    _

</llo_original>
